<compile_context>
chip_gen: v7x
topology: tpu7x:2x2x1
jax: 0.10.0
libtpu: 0.0.40
codegen_flags: <defaults>
</compile_context>

<pallas_src>
import functools

import jax
import jax.numpy as jnp
from jax.experimental import pallas as pl
from jax.experimental.pallas import tpu as pltpu


def _round_up(x, m):
    return ((x + m - 1) // m) * m


def _relpos_kernel(rj_ref, ri_ref, mi_ref, emb_ref, out_ref, *, bins):
    # rj_ref : (1, 1, TJ)      int32  residue_index[j] for this column tile
    # ri_ref : (1, TI, 1)      int32  residue_index[i] for this row tile
    # mi_ref : (1, TI, 1)      int32  mask[i] for this row tile
    # emb_ref: (2V, D)         bf16   rows [0,V) = hi half, rows [V,2V) = lo half
    # out_ref: (1, TI, TJ, D)  f32
    v2, d = emb_ref.shape
    vocab = v2 // 2
    ti = ri_ref.shape[1]
    tj = rj_ref.shape[2]

    rj = rj_ref[0]                                   # (1, TJ)
    ri = ri_ref[0]                                   # (TI, 1)
    mi = mi_ref[0]                                   # (TI, 1)

    # diff[i, j] = r[j] - r[i]  (== residue_index[:, None, :] - residue_index[:, :, None])
    diff = rj - ri                                   # (TI, TJ) int32
    diff = jnp.clip(diff, -bins, bins) + (bins + 1)
    # torch: diff[mask == 0] = 0  -> zeroes whole rows along the i axis.
    diff = jnp.where(mi != 0, diff, 0)               # (TI, TJ)

    # "Two-hot" gather: rows v and v+V of the stacked table hold the hi/lo bf16
    # halves of table[v]; selecting both lets the MXU's f32 accumulator sum them,
    # reproducing the f32 gather to ~2^-16 relative error.  Compares are int32 and
    # converted once to bf16 so the dot is a true bf16 x bf16 MXU matmul.
    iota = jax.lax.broadcasted_iota(jnp.int32, (1, 1, v2), 2)
    iota = jnp.where(iota < vocab, iota, iota - vocab)
    twohot = (diff[:, :, None] == iota).astype(jnp.bfloat16)      # (TI, TJ, 2V)
    out2d = jnp.dot(twohot.reshape(ti * tj, v2), emb_ref[...],
                    preferred_element_type=jnp.float32)            # (TI*TJ, D) f32
    out_ref[...] = out2d.reshape(1, ti, tj, d).astype(out_ref.dtype)


def relative_position(residue_index, mask, emb_table, bins):
    """residue_index: (B, L) int, mask: (B, L) int/bool, emb_table: (V, D) f32."""
    B, L = residue_index.shape
    V, D = emb_table.shape

    # --- hi/lo bf16 split of the table, stacked along the vocab axis --------
    emb_f32 = emb_table.astype(jnp.float32)
    emb_hi = emb_f32.astype(jnp.bfloat16)
    emb_lo = (emb_f32 - emb_hi.astype(jnp.float32)).astype(jnp.bfloat16)
    emb_stacked = jnp.concatenate([emb_hi, emb_lo], axis=0)        # (2V, D) bf16

    # --- tiling --------------------------------------------------------------
    # j tile: whole row for small L (full-dim blocks need no 128 alignment), else
    # lane-aligned 128-wide column tiles.
    if L <= 128:
        tj = L
        lj = L
    else:
        tj = 128
        lj = _round_up(L, tj)

    # i tile: cap the f32 output tile at ~2 MiB.  Streaming-write kernel: ~2-4 MiB
    # blocks already sit on the HBM roofline; larger only raises VMEM/spill pressure
    # (v7x has 64 MiB VMEM).  max(D, 128) accounts for lane padding when D < 128.
    lane_d = _round_up(D, 128)
    target_tile_bytes = 2 * 1024 * 1024
    ti = max(8, (target_tile_bytes // (tj * lane_d * 4)) // 8 * 8)
    ti = int(min(ti, _round_up(L, 8)))
    li = _round_up(L, ti)

    # Pad in the wrapper so every tile is full (hot path unmasked).  Padded rows get
    # mask == 0 (collapse to table[0]); padded cols read index 0.  Both sliced off.
    ridx = residue_index.astype(jnp.int32)
    msk = mask.astype(jnp.int32)
    rj_in = jnp.pad(ridx, ((0, 0), (0, lj - L))).reshape(B, 1, lj)
    ri_in = jnp.pad(ridx, ((0, 0), (0, li - L))).reshape(B, li, 1)
    mi_in = jnp.pad(msk, ((0, 0), (0, li - L))).reshape(B, li, 1)

    kernel = functools.partial(_relpos_kernel, bins=bins)
    out = pl.pallas_call(
        kernel,
        out_shape=jax.ShapeDtypeStruct((B, li, lj, D), emb_table.dtype),
        grid=(B, li // ti, lj // tj),
        in_specs=[
            pl.BlockSpec((1, 1, tj), lambda b, i, j: (b, 0, j)),   # residue_index[j]
            pl.BlockSpec((1, ti, 1), lambda b, i, j: (b, i, 0)),   # residue_index[i]
            pl.BlockSpec((1, ti, 1), lambda b, i, j: (b, i, 0)),   # mask[i]
            pl.BlockSpec((2 * V, D), lambda b, i, j: (0, 0)),      # stacked hi/lo table
        ],
        out_specs=pl.BlockSpec((1, ti, tj, D), lambda b, i, j: (b, i, j, 0)),
        compiler_params=pltpu.CompilerParams(
            # No cross-step state -> all axes parallel (v7x's 2 TCs shard the grid).
            dimension_semantics=("parallel", "parallel", "parallel"),
            # Per-step usage is ~8-10 MiB (2 MiB out x 2 buffers + matmul
            # intermediates); 32 MiB leaves headroom on every generation incl. v7x.
            vmem_limit_bytes=32 * 1024 * 1024,
        ),
    )(rj_in, ri_in, mi_in, emb_stacked)

    if li != L or lj != L:
        out = out[:, :L, :L, :]
    return out


def _reference(residue_index, mask, emb_table, bins):
    diff = residue_index[:, None, :] - residue_index[:, :, None]
    diff = jnp.clip(diff, -bins, bins) + bins + 1
    diff = jnp.where(mask[:, :, None] != 0, diff, 0)   # rows with mask[b, i]==0 -> 0
    return emb_table[diff]


def _check(out, ref):
    # hi/lo bf16 table split reproduces the exact f32 gather to ~2^-16 relative.
    assert out.shape == ref.shape, (out.shape, ref.shape)
    err = float(jnp.max(jnp.abs(out - ref)))
    assert jnp.allclose(out, ref, atol=1e-5, rtol=5e-5), err


if __name__ == "__main__":
    bins = 8
    V = 2 * bins + 2
    key = jax.random.PRNGKey(0)
    ks = jax.random.split(key, 9)

    # --- test 1: production-like pairwise dim (D=128), small aligned L -------
    D1, B1, L1 = 128, 2, 16
    emb1 = jax.random.normal(ks[0], (V, D1), dtype=jnp.float32)
    ridx1 = jax.random.randint(ks[1], (B1, L1), 0, 40, dtype=jnp.int32)
    mask1 = (jax.random.uniform(ks[2], (B1, L1)) > 0.2).astype(jnp.int32)
    out1 = jax.block_until_ready(relative_position(ridx1, mask1, emb1, bins))
    _check(out1, _reference(ridx1, mask1, emb1, bins))

    # --- test 2: D < 128 and non-multiple-of-8 L (row padding path) ----------
    D2, B2, L2 = 32, 1, 20
    emb2 = jax.random.normal(ks[3], (V, D2), dtype=jnp.float32)
    ridx2 = jax.random.randint(ks[4], (B2, L2), 0, 60, dtype=jnp.int32)
    mask2 = (jax.random.uniform(ks[5], (B2, L2)) > 0.3).astype(jnp.int32)
    out2 = jax.block_until_ready(relative_position(ridx2, mask2, emb2, bins))
    _check(out2, _reference(ridx2, mask2, emb2, bins))

    # --- test 3: L > 128 exercises the tiled i/j grid plus row+col padding ---
    D3, B3, L3 = 128, 1, 200
    emb3 = jax.random.normal(ks[6], (V, D3), dtype=jnp.float32)
    ridx3 = jax.random.randint(ks[7], (B3, L3), 0, 400, dtype=jnp.int32)
    mask3 = (jax.random.uniform(ks[8], (B3, L3)) > 0.1).astype(jnp.int32)
    out3 = jax.block_until_ready(relative_position(ridx3, mask3, emb3, bins))
    _check(out3, _reference(ridx3, mask3, emb3, bins))

    print("KERNEL_OK")
</pallas_src>

<mosaic_0001>
module attributes {stable_mosaic.version = 11 : i64} {
  func.func @_relpos_kernel(%arg0: i32, %arg1: i32, %arg2: i32, %arg3: memref<1x1x16xi32, #tpu.memory_space<vmem>>, %arg4: memref<1x16x1xi32, #tpu.memory_space<vmem>>, %arg5: memref<1x16x1xi32, #tpu.memory_space<vmem>>, %arg6: memref<36x128xbf16, #tpu.memory_space<vmem>>, %arg7: memref<1x16x16x128xf32, #tpu.memory_space<vmem>>) attributes {dimension_semantics = [#tpu.dimension_semantics<parallel>, #tpu.dimension_semantics<parallel>, #tpu.dimension_semantics<parallel>], iteration_bounds = array<i64: 2, 1, 1>, scalar_prefetch = 0 : i64, scratch_operands = 0 : i64, tpu.core_type = #tpu.core_type<tc>, window_params = [{transform_indices = @transform_0, window_bounds = array<i64: 1, 1, 16>}, {transform_indices = @transform_1, window_bounds = array<i64: 1, 16, 1>}, {transform_indices = @transform_2, window_bounds = array<i64: 1, 16, 1>}, {pipeline_mode = #tpu.pipeline_mode<synchronous>, transform_indices = @transform_3, window_bounds = array<i64: 36, 128>}, {transform_indices = @transform_4, window_bounds = array<i64: 1, 16, 16, 128>}]} {
    %c0 = arith.constant 0 : index
    %c0_0 = arith.constant 0 : index
    %c0_1 = arith.constant 0 : index
    %0 = vector.load %arg3[%c0, %c0_0, %c0_1] : memref<1x1x16xi32, #tpu.memory_space<vmem>>, vector<1x1x16xi32>
    %1 = vector.shape_cast %0 : vector<1x1x16xi32> to vector<1x16xi32>
    %c0_2 = arith.constant 0 : index
    %c0_3 = arith.constant 0 : index
    %c0_4 = arith.constant 0 : index
    %2 = vector.load %arg4[%c0_2, %c0_3, %c0_4] : memref<1x16x1xi32, #tpu.memory_space<vmem>>, vector<1x16x1xi32>
    %3 = vector.shape_cast %2 : vector<1x16x1xi32> to vector<16x1xi32>
    %c0_5 = arith.constant 0 : index
    %c0_6 = arith.constant 0 : index
    %c0_7 = arith.constant 0 : index
    %4 = vector.load %arg5[%c0_5, %c0_6, %c0_7] : memref<1x16x1xi32, #tpu.memory_space<vmem>>, vector<1x16x1xi32>
    %5 = vector.shape_cast %4 : vector<1x16x1xi32> to vector<16x1xi32>
    %6 = vector.broadcast %1 : vector<1x16xi32> to vector<16x16xi32>
    %7 = vector.broadcast %3 : vector<16x1xi32> to vector<16x16xi32>
    %8 = arith.subi %6, %7 : vector<16x16xi32>
    %c-8_i32 = arith.constant -8 : i32
    %c8_i32 = arith.constant 8 : i32
    %9 = vector.broadcast %c-8_i32 : i32 to vector<16x16xi32>
    %10 = arith.maxsi %9, %8 : vector<16x16xi32>
    %11 = vector.broadcast %c8_i32 : i32 to vector<16x16xi32>
    %12 = arith.minsi %11, %10 : vector<16x16xi32>
    %c9_i32 = arith.constant 9 : i32
    %13 = vector.broadcast %c9_i32 : i32 to vector<16x16xi32>
    %14 = arith.addi %12, %13 : vector<16x16xi32>
    %c0_i32 = arith.constant 0 : i32
    %15 = vector.broadcast %c0_i32 : i32 to vector<16x1xi32>
    %16 = arith.cmpi ne, %5, %15 : vector<16x1xi32>
    %c0_i32_8 = arith.constant 0 : i32
    %17 = vector.shape_cast %16 : vector<16x1xi1> to vector<16x1xi1>
    %18 = vector.broadcast %17 : vector<16x1xi1> to vector<16x16xi1>
    %19 = vector.broadcast %c0_i32_8 : i32 to vector<16x16xi32>
    %20 = arith.select %18, %14, %19 : vector<16x16xi1>, vector<16x16xi32>
    %21 = tpu.iota {dimensions = array<i32: 2>} : vector<1x1x36xi32>
    %c18_i32 = arith.constant 18 : i32
    %22 = vector.broadcast %c18_i32 : i32 to vector<1x1x36xi32>
    %23 = arith.cmpi slt, %21, %22 : vector<1x1x36xi32>
    %c18_i32_9 = arith.constant 18 : i32
    %24 = vector.broadcast %c18_i32_9 : i32 to vector<1x1x36xi32>
    %25 = arith.subi %21, %24 : vector<1x1x36xi32>
    %26 = arith.select %23, %21, %25 : vector<1x1x36xi1>, vector<1x1x36xi32>
    %27 = vector.shape_cast %20 : vector<16x16xi32> to vector<16x16x1xi32>
    %28 = vector.broadcast %27 : vector<16x16x1xi32> to vector<16x16x36xi32>
    %29 = vector.broadcast %26 : vector<1x1x36xi32> to vector<16x16x36xi32>
    %30 = arith.cmpi eq, %28, %29 : vector<16x16x36xi32>
    %31 = arith.extui %30 : vector<16x16x36xi1> to vector<16x16x36xi32>
    %32 = arith.sitofp %31 : vector<16x16x36xi32> to vector<16x16x36xf32>
    %33 = arith.truncf %32 : vector<16x16x36xf32> to vector<16x16x36xbf16>
    %34 = vector.shape_cast %33 : vector<16x16x36xbf16> to vector<256x36xbf16>
    %c0_10 = arith.constant 0 : index
    %c0_11 = arith.constant 0 : index
    %35 = vector.load %arg6[%c0_10, %c0_11] : memref<36x128xbf16, #tpu.memory_space<vmem>>, vector<36x128xbf16>
    %cst = arith.constant dense<0.000000e+00> : vector<256x128xf32>
    %36 = tpu.matmul %34, %35, %cst {dimension_numbers = #tpu.dot_dimension_numbers<[1], [0], [0], [1], [0, 0, 1, 1], [], []>} : vector<256x36xbf16>, vector<36x128xbf16>, vector<256x128xf32> -> vector<256x128xf32>
    %37 = vector.shape_cast %36 : vector<256x128xf32> to vector<1x16x16x128xf32>
    %c0_12 = arith.constant 0 : index
    %c0_13 = arith.constant 0 : index
    %c0_14 = arith.constant 0 : index
    %c0_15 = arith.constant 0 : index
    %38 = vector.load %arg7[%c0_12, %c0_13, %c0_14, %c0_15] : memref<1x16x16x128xf32, #tpu.memory_space<vmem>>, vector<1x16x16x128xf32>
    tpu.vector_store %arg7[%c0_12, %c0_13, %c0_14, %c0_15], %37 {strides = array<i32>} : memref<1x16x16x128xf32, #tpu.memory_space<vmem>>, vector<1x16x16x128xf32>,
    return
  }
  func.func @transform_0(%arg0: i32, %arg1: i32, %arg2: i32) -> (i32, i32, i32) {
    %c0_i32 = arith.constant 0 : i32
    %c0_i32_0 = arith.constant 0 : i32
    return %arg0, %c0_i32, %arg2 : i32, i32, i32
  }
  func.func @transform_1(%arg0: i32, %arg1: i32, %arg2: i32) -> (i32, i32, i32) {
    %c0_i32 = arith.constant 0 : i32
    %c0_i32_0 = arith.constant 0 : i32
    return %arg0, %arg1, %c0_i32 : i32, i32, i32
  }
  func.func @transform_2(%arg0: i32, %arg1: i32, %arg2: i32) -> (i32, i32, i32) {
    %c0_i32 = arith.constant 0 : i32
    %c0_i32_0 = arith.constant 0 : i32
    return %arg0, %arg1, %c0_i32 : i32, i32, i32
  }
  func.func @transform_3(%arg0: i32, %arg1: i32, %arg2: i32) -> (i32, i32) {
    %c0_i32 = arith.constant 0 : i32
    %c0_i32_0 = arith.constant 0 : i32
    %c0_i32_1 = arith.constant 0 : i32
    return %c0_i32, %c0_i32_0 : i32, i32
  }
  func.func @transform_4(%arg0: i32, %arg1: i32, %arg2: i32) -> (i32, i32, i32, i32) {
    %c0_i32 = arith.constant 0 : i32
    %c0_i32_0 = arith.constant 0 : i32
    return %arg0, %arg1, %arg2, %c0_i32 : i32, i32, i32, i32
  }
}

</mosaic_0001>

<llo_original>
// kernel: tpu_custom_call.1
$region0: #{tpu_custom_call.1}
  #allocation0 [shape = 'u32[]', space=smem, size = 0x4, offset = 0x4, fixed_abs, tag = 'smem constant byte address 0x4 - core index']
  #allocation1 [shape = 'u32[144,128]{1,0:T(1,128)}', space=vmem, size = 0x12000, scoped, tag = 'internal scratch']
  %s0 = inlined_call_operand.vmem [shape: s32[2,1,16], index: 0, kind: input, shape index: {}]
  %s1 = inlined_call_operand.vmem [shape: s32[2,16,1], index: 1, kind: input, shape index: {}]
  %s2 = inlined_call_operand.vmem [shape: s32[2,16,1], index: 2, kind: input, shape index: {}]
  %s3 = inlined_call_operand.vmem [shape: bf16[36,128], index: 3, kind: input, shape index: {}]
  %s4 = inlined_call_operand.hbm [shape: f32[2,16,16,128], index: 4, kind: output, shape index: {}]
  %s5 = sld [smem:[#allocation0]]
  $region49: #{tpu_custom_call.1} parent=0
    _
  %s7 = ssub.s32 1, %s5
  %s8 = scalar_select 0, %s7, %s5
  $region1: #{tpu_custom_call.1} parent=0
    #allocation2 [shape = 'u8[262144]{0}', space=vmem, size = 0x40000, scoped, tag = 'output window, operand 0']
    #allocation3 [shape = 's32[2]{0}', space=sflag, size = 0x8, scoped, tag = 'scoped memory for tpu_custom_call.1']
    %9 = vsyncpa [#allocation3], 0
    %s10 = scalar_lea.sflag [#allocation3], 1
    %11 = vsyncpa %s10, 0
    loop: start=0, step=1, limit=4
    $region2: #{tpu_custom_call.1} parent=1 // loop_pre_header
      _
    $region3: #{tpu_custom_call.1} parent=1 // loop_header
      %s13 = sphi 0, %s17
      %p14 = scmp.ge.s32.totalorder %s13, 4
      %s20 = sphi 0, %s39
      %s21 = sphi 0, %s35
      %s22 = sphi 0, %s31
      %s23 = sphi 0, %s20
      %s24 = sphi 0, %s21
      %s25 = sphi 0, %s22
      %s26 = sphi 0, %s23
      %s27 = sphi 0, %s24
      %s28 = sphi 0, %s25
      %s44 = sphi 0, %s46
      %s47 = sphi 0, %s44
      %s48 = sphi 0, %s47
      %s64 = sphi 0, %s48
      %s72 = sphi 0, %s74
      %s75 = sphi 0, %s72
      %s76 = sphi 0, %s75
      %s92 = sphi 0, %s76
      %s100 = sphi 0, %s102
      %s103 = sphi 0, %s100
      %s104 = sphi 0, %s103
      %s120 = sphi 0, %s104
      %s124 = sphi 0, %s124
      %s126 = sphi 0, %s124
      %s127 = sphi 0, %s126
      %s141 = sphi 0, %s127
      %s151 = sphi 0, %s153
      %s154 = sphi 0, %s151
      %s155 = sphi 0, %s154
      %s171 = sphi 0, %s155
    $region4: #{tpu_custom_call.1} parent=1 // loop_header_branch
      %16 = sbr.rel (%p14) target = $region8
    $region5: #{tpu_custom_call.1} parent=1 // loop_body
      %s18 = ssub.s32 %s13, 1
      %s19 = ssub.s32 %s13, 2
      %s29 = sadd.s32 1, %s22
      %p30 = scmp.ge.s32.totalorder %s29, 1
      %s31 = scalar_select %p30, 0, %s29
      %s32 = sadd.s32 1, %s21
      %s33 = scalar_select %p30, %s32, %s21
      %p34 = scmp.ge.s32.totalorder %s33, 1
      %s35 = scalar_select %p34, 0, %s33
      %s36 = sadd.s32 1, %s20
      %s37 = scalar_select %p34, %s36, %s20
      %p38 = scmp.ge.s32.totalorder %s37, 2
      %s39 = scalar_select %p38, 0, %s37
      %s40 = ssub.s32 %s20, %s39
      %s41 = ssub.s32 %s22, %s31
      %s42 = sor.u32 %s40, %s41
      %p43 = scmp.eq.s32.totalorder %s42, 0
      %s45 = sadd.s32 %s44, 1
      %s46 = scalar_select %p43, %s44, %s45
      %p49 = pneg %p43
      %p50 = scmp.eq.s32.totalorder %s13, 1
      %p51 = por %p49, %p50
      %p52 = scmp.ne.s32.totalorder %s44, %s47
      %p53 = scmp.eq.s32.totalorder %s13, 0
      %p54 = por %p52, %p53
      %p55 = scmp.ne.s32.totalorder %s44, %s47
      %p56 = scmp.eq.s32.totalorder %s18, 1
      %p57 = por %p55, %p56
      %p58 = scmp.ne.s32.totalorder %s47, %s48
      %p59 = scmp.eq.s32.totalorder %s18, 0
      %p60 = por %p58, %p59
      %p61 = scmp.ne.s32.totalorder %s47, %s48
      %p62 = scmp.eq.s32.totalorder %s19, 1
      %p63 = por %p61, %p62
      %p65 = scmp.ne.s32.totalorder %s48, %s64
      %p66 = scmp.eq.s32.totalorder %s19, 0
      %p67 = por %p65, %p66
      %s68 = ssub.s32 %s20, %s39
      %s69 = ssub.s32 %s21, %s35
      %s70 = sor.u32 %s68, %s69
      %p71 = scmp.eq.s32.totalorder %s70, 0
      %s73 = sadd.s32 %s72, 1
      %s74 = scalar_select %p71, %s72, %s73
      %p77 = pneg %p71
      %p78 = scmp.eq.s32.totalorder %s13, 1
      %p79 = por %p77, %p78
      %p80 = scmp.ne.s32.totalorder %s72, %s75
      %p81 = scmp.eq.s32.totalorder %s13, 0
      %p82 = por %p80, %p81
      %p83 = scmp.ne.s32.totalorder %s72, %s75
      %p84 = scmp.eq.s32.totalorder %s18, 1
      %p85 = por %p83, %p84
      %p86 = scmp.ne.s32.totalorder %s75, %s76
      %p87 = scmp.eq.s32.totalorder %s18, 0
      %p88 = por %p86, %p87
      %p89 = scmp.ne.s32.totalorder %s75, %s76
      %p90 = scmp.eq.s32.totalorder %s19, 1
      %p91 = por %p89, %p90
      %p93 = scmp.ne.s32.totalorder %s76, %s92
      %p94 = scmp.eq.s32.totalorder %s19, 0
      %p95 = por %p93, %p94
      %s96 = ssub.s32 %s20, %s39
      %s97 = ssub.s32 %s21, %s35
      %s98 = sor.u32 %s96, %s97
      %p99 = scmp.eq.s32.totalorder %s98, 0
      %s101 = sadd.s32 %s100, 1
      %s102 = scalar_select %p99, %s100, %s101
      %p105 = pneg %p99
      %p106 = scmp.eq.s32.totalorder %s13, 1
      %p107 = por %p105, %p106
      %p108 = scmp.ne.s32.totalorder %s100, %s103
      %p109 = scmp.eq.s32.totalorder %s13, 0
      %p110 = por %p108, %p109
      %p111 = scmp.ne.s32.totalorder %s100, %s103
      %p112 = scmp.eq.s32.totalorder %s18, 1
      %p113 = por %p111, %p112
      %p114 = scmp.ne.s32.totalorder %s103, %s104
      %p115 = scmp.eq.s32.totalorder %s18, 0
      %p116 = por %p114, %p115
      %p117 = scmp.ne.s32.totalorder %s103, %s104
      %p118 = scmp.eq.s32.totalorder %s19, 1
      %p119 = por %p117, %p118
      %p121 = scmp.ne.s32.totalorder %s104, %s120
      %p122 = scmp.eq.s32.totalorder %s19, 0
      %p123 = por %p121, %p122
      %s125 = sadd.s32 %s124, 1
      %p128 = scmp.eq.s32.totalorder %s13, 1
      %p129 = scmp.ne.s32.totalorder %s124, %s126
      %p130 = scmp.eq.s32.totalorder %s13, 0
      %p131 = por %p129, %p130
      %p132 = scmp.ne.s32.totalorder %s124, %s126
      %p133 = scmp.eq.s32.totalorder %s18, 1
      %p134 = por %p132, %p133
      %p135 = scmp.ne.s32.totalorder %s126, %s127
      %p136 = scmp.eq.s32.totalorder %s18, 0
      %p137 = por %p135, %p136
      %p138 = scmp.ne.s32.totalorder %s126, %s127
      %p139 = scmp.eq.s32.totalorder %s19, 1
      %p140 = por %p138, %p139
      %p142 = scmp.ne.s32.totalorder %s127, %s141
      %p143 = scmp.eq.s32.totalorder %s19, 0
      %p144 = por %p142, %p143
      %s145 = ssub.s32 %s20, %s39
      %s146 = ssub.s32 %s21, %s35
      %s147 = sor.u32 %s145, %s146
      %s148 = ssub.s32 %s22, %s31
      %s149 = sor.u32 %s147, %s148
      %p150 = scmp.eq.s32.totalorder %s149, 0
      %s152 = sadd.s32 %s151, 1
      %s153 = scalar_select %p150, %s151, %s152
      %p156 = pneg %p150
      %p157 = scmp.eq.s32.totalorder %s13, 1
      %p158 = por %p156, %p157
      %p159 = scmp.ne.s32.totalorder %s151, %s154
      %p160 = scmp.eq.s32.totalorder %s13, 0
      %p161 = por %p159, %p160
      %p162 = scmp.ne.s32.totalorder %s151, %s154
      %p163 = scmp.eq.s32.totalorder %s18, 1
      %p164 = por %p162, %p163
      %p165 = scmp.ne.s32.totalorder %s154, %s155
      %p166 = scmp.eq.s32.totalorder %s18, 0
      %p167 = por %p165, %p166
      %p168 = scmp.ne.s32.totalorder %s154, %s155
      %p169 = scmp.eq.s32.totalorder %s19, 1
      %p170 = por %p168, %p169
      %p172 = scmp.ne.s32.totalorder %s155, %s171
      %p173 = scmp.eq.s32.totalorder %s19, 0
      %p174 = por %p172, %p173
      %p175 = scmp.le.s32.totalorder 1, %s13
      %p176 = scmp.lt.s32.totalorder %s13, 3
      %p177 = pnand %p175, %p176
      %p178 = pneg %p177
      // Predicated region
      $region9: #{tpu_custom_call.1} parent=5 // pred_check
        _
      $region10: #{tpu_custom_call.1} parent=5 // pred_check_branch
        %180 = sbr.rel (%p177) target = $region12
      $region11: #{tpu_custom_call.1} parent=5 // pred_region
        %s181 = ssub.s32 %s13, 1
        // Predicated region
        $region13: #{tpu_custom_call.1} parent=11 // pred_check
          %p182 = pneg %p137
        $region14: #{tpu_custom_call.1} parent=11 // pred_check_branch
          %184 = sbr.rel (%p182) target = $region16
        $region15: #{tpu_custom_call.1} parent=11 // pred_region
          _
        $region16: #{tpu_custom_call.1} parent=11 // pred_fallthru
          _
      $region12: #{tpu_custom_call.1} parent=5 // pred_fallthru
        _
      %p185 = scmp.lt.s32.totalorder %s13, 2
      // Predicated region
      $region17: #{tpu_custom_call.1} parent=5 // pred_check
        %p186 = pneg %p185
      $region18: #{tpu_custom_call.1} parent=5 // pred_check_branch
        %188 = sbr.rel (%p186) target = $region20
      $region19: #{tpu_custom_call.1} parent=5 // pred_region
        // Predicated region
        $region21: #{tpu_custom_call.1} parent=19 // pred_check
          %p189 = pneg %p54
        $region22: #{tpu_custom_call.1} parent=19 // pred_check_branch
          %191 = sbr.rel (%p189) target = $region24
        $region23: #{tpu_custom_call.1} parent=19 // pred_region
          %p192 = scmp.lt.s32.totalorder %s20, 1
          %s193 = scalar_select %p192, %s20, 1
          %p194 = scmp.lt.s32.totalorder %s22, 0
          %s195 = scalar_select %p194, %s22, 0
          %s196 = sadd.s32 %s195, %s193
          %s197 = scalar_lea.vmem %s0, %s196
        $region24: #{tpu_custom_call.1} parent=19 // pred_fallthru
          _
        // Predicated region
        $region25: #{tpu_custom_call.1} parent=19 // pred_check
          %p198 = pneg %p82
        $region26: #{tpu_custom_call.1} parent=19 // pred_check_branch
          %200 = sbr.rel (%p198) target = $region28
        $region27: #{tpu_custom_call.1} parent=19 // pred_region
          %s201 = smul.u32 2, %s21
          %p202 = scmp.lt.s32.totalorder %s20, 1
          %s203 = scalar_select %p202, %s20, 1
          %p204 = scmp.lt.s32.totalorder %s201, 1
          %s205 = scalar_select %p204, %s201, 1
          %s206 = smul.addr %s203, 2
          %s207 = sadd.s32 %s205, %s206
          %s208 = smul.addr %s207, 8
          %s209 = scalar_lea.vmem %s1, %s208
          %s210 = smul.u32 2, %s21
        $region28: #{tpu_custom_call.1} parent=19 // pred_fallthru
          _
        // Predicated region
        $region29: #{tpu_custom_call.1} parent=19 // pred_check
          %p211 = pneg %p110
        $region30: #{tpu_custom_call.1} parent=19 // pred_check_branch
          %213 = sbr.rel (%p211) target = $region32
        $region31: #{tpu_custom_call.1} parent=19 // pred_region
          %s214 = smul.u32 2, %s21
          %p215 = scmp.lt.s32.totalorder %s20, 1
          %s216 = scalar_select %p215, %s20, 1
          %p217 = scmp.lt.s32.totalorder %s214, 1
          %s218 = scalar_select %p217, %s214, 1
          %s219 = smul.addr %s216, 2
          %s220 = sadd.s32 %s218, %s219
          %s221 = smul.addr %s220, 8
          %s222 = scalar_lea.vmem %s2, %s221
          %s223 = smul.u32 2, %s21
        $region32: #{tpu_custom_call.1} parent=19 // pred_fallthru
          _
      $region20: #{tpu_custom_call.1} parent=5 // pred_fallthru
        _
      %p224 = scmp.le.s32.totalorder 1, %s13
      %p225 = scmp.lt.s32.totalorder %s13, 3
      %p226 = pnand %p224, %p225
      %p227 = pneg %p226
      // Predicated region
      $region33: #{tpu_custom_call.1} parent=5 // pred_check
        _
      $region34: #{tpu_custom_call.1} parent=5 // pred_check_branch
        %229 = sbr.rel (%p226) target = $region36
      $region35: #{tpu_custom_call.1} parent=5 // pred_region
        %s230 = ssub.s32 %s13, 1
        %p231 = scmp.lt.s32.totalorder %s23, 1
        %s232 = scalar_select %p231, %s23, 1
        %p233 = scmp.lt.s32.totalorder %s25, 0
        %s234 = scalar_select %p233, %s25, 0
        %s235 = sadd.s32 %s234, %s232
        %s236 = scalar_lea.vmem %s0, %s235
        %p237 = pneg %p60
        %p238 = pneg %p57
        %s239 = smul.u32 2, %s24
        %p240 = scmp.lt.s32.totalorder %s23, 1
        %s241 = scalar_select %p240, %s23, 1
        %p242 = scmp.lt.s32.totalorder %s239, 1
        %s243 = scalar_select %p242, %s239, 1
        %s244 = smul.addr %s241, 2
        %s245 = sadd.s32 %s243, %s244
        %s246 = smul.addr %s245, 8
        %s247 = scalar_lea.vmem %s1, %s246
        %p248 = pneg %p88
        %p249 = pneg %p85
        %s250 = smul.u32 2, %s24
        %p251 = scmp.lt.s32.totalorder %s23, 1
        %s252 = scalar_select %p251, %s23, 1
        %p253 = scmp.lt.s32.totalorder %s250, 1
        %s254 = scalar_select %p253, %s250, 1
        %s255 = smul.addr %s252, 2
        %s256 = sadd.s32 %s254, %s255
        %s257 = smul.addr %s256, 8
        %s258 = scalar_lea.vmem %s2, %s257
        %p259 = pneg %p116
        %p260 = pneg %p113
        %p261 = pneg %p137
        %p262 = pneg %p134
        %p263 = pneg %p167
        %p264 = pneg %p164
        %s265 = sand.u32 %s154, 1
        %s266 = scalar_lea.sflag [#allocation3], %s265
        %s267 = sand.u32 %s154, 1
        %s268 = smul.addr %s267, 256
        %s269 = scalar_lea.vmem [#allocation2], %s268
        %p270 = scmp.lt.s32.totalorder %s23, 1
        %s271 = scalar_select %p270, %s23, 1
        %p272 = scmp.lt.s32.totalorder %s25, 0
        %s273 = scalar_select %p272, %s25, 0
        %s274 = sadd.s32 %s273, %s271
        %s275 = scalar_lea.vmem %s0, %s274
        %s276 = smul.u32 2, %s24
        %p277 = scmp.lt.s32.totalorder %s23, 1
        %s278 = scalar_select %p277, %s23, 1
        %p279 = scmp.lt.s32.totalorder %s276, 1
        %s280 = scalar_select %p279, %s276, 1
        %s281 = smul.addr %s278, 2
        %s282 = sadd.s32 %s280, %s281
        %s283 = smul.addr %s282, 8
        %s284 = scalar_lea.vmem %s1, %s283
        %s285 = smul.u32 2, %s24
        %s286 = smul.u32 2, %s24
        %p287 = scmp.lt.s32.totalorder %s23, 1
        %s288 = scalar_select %p287, %s23, 1
        %p289 = scmp.lt.s32.totalorder %s286, 1
        %s290 = scalar_select %p289, %s286, 1
        %s291 = smul.addr %s288, 2
        %s292 = sadd.s32 %s290, %s291
        %s293 = smul.addr %s292, 8
        %s294 = scalar_lea.vmem %s2, %s293
        %s295 = smul.u32 2, %s24
        %s296 = smul.u32 16, %s24
        %s297 = smul.u32 2, %s25
        %v299 = vld [vmem:[%s275] sm:$0x1]
        %v300 = vld [vmem:[%s284] sm:$0xff]
        %v301 = vld [vmem:[%s284 + $0x8] sm:$0xff]
        %v302 = vld [vmem:[%s294] sm:$0xff]
        %v303 = vld [vmem:[%s294 + $0x8] sm:$0xff]
        %v304 = vlaneseq
        %v305 = vshrl.u32 %v304, 7
        %v306 = vsub.s32 0, %v305
        %v307 = vrot.slane %v299, %v306
        %308 = vset.pattern.permute.xlu0 0
        %309 = vperm.xlu0 %308, %v300
        %v310 = vpop.permute.xlu0 %309
        %311 = vset.pattern.permute.xlu0 0
        %312 = vperm.xlu0 %311, %v301
        %v313 = vpop.permute.xlu0 %312
        %v314 = vsub.s32 %v307, %v310
        %v315 = vsub.s32 %v307, %v313
        %vm316 = vcmp.gt.s32.totalorder %v314, 4294967288
        %v317 = vsel %vm316, %v314, 4294967288
        %vm318 = vcmp.gt.s32.totalorder %v315, 4294967288
        %v319 = vsel %vm318, %v315, 4294967288
        %vm320 = vcmp.lt.s32.totalorder %v317, 8
        %v321 = vsel %vm320, %v317, 8
        %vm322 = vcmp.lt.s32.totalorder %v319, 8
        %v323 = vsel %vm322, %v319, 8
        %v324 = vadd.s32 %v321, 9
        %v325 = vadd.s32 %v323, 9
        %vm326 = vcmp.ne.s32.totalorder %v302, 0
        %vm327 = vcmp.ne.s32.totalorder %v303, 0
        %v328 = vsel %vm326, 1, 0
        %v329 = vsel %vm327, 1, 0
        %330 = vset.pattern.permute.xlu0 0
        %331 = vperm.xlu0 %330, %v328
        %v332 = vpop.permute.xlu0 %331
        %333 = vset.pattern.permute.xlu0 0
        %334 = vperm.xlu0 %333, %v329
        %v335 = vpop.permute.xlu0 %334
        %vm336 = vcmp.eq.s32.totalorder %v332, 1
        %vm337 = vcmp.eq.s32.totalorder %v335, 1
        %v338 = vsel %vm336, %v324, 0
        %v339 = vsel %vm337, %v325, 0
        %v340 = vlaneseq
        %v341 = vand.u32 %v340, 127
        %vm342 = vcmp.lt.s32.totalorder %v341, 18
        %v343 = vsub.s32 %v341, 18
        %v344 = vsel %vm342, %v341, %v343
        %v345 = vlaneseq
        %v346 = vshrl.u32 %v345, 7
        %v347 = vsub.s32 0, %v346
        %v348 = vrot.slane %v338, %v347
        %350 = vbcast.lane.b32.xlu0 %v348, 256
        %v351 = vpop.permute.xlu0 %350
        %s353 = sor.u32 256, 8
        %354 = vbcast.lane.b32.xlu0 %v348, %s353
        %v355 = vpop.permute.xlu0 %354
        %v356 = vlaneseq
        %v357 = vshrl.u32 %v356, 7
        %v358 = vsub.s32 1, %v357
        %v359 = vrot.slane %v338, %v358
        %361 = vbcast.lane.b32.xlu0 %v359, 256
        %v362 = vpop.permute.xlu0 %361
        %s364 = sor.u32 256, 8
        %365 = vbcast.lane.b32.xlu0 %v359, %s364
        %v366 = vpop.permute.xlu0 %365
        %v367 = vlaneseq
        %v368 = vshrl.u32 %v367, 7
        %v369 = vsub.s32 2, %v368
        %v370 = vrot.slane %v338, %v369
        %372 = vbcast.lane.b32.xlu0 %v370, 256
        %v373 = vpop.permute.xlu0 %372
        %s375 = sor.u32 256, 8
        %376 = vbcast.lane.b32.xlu0 %v370, %s375
        %v377 = vpop.permute.xlu0 %376
        %v378 = vlaneseq
        %v379 = vshrl.u32 %v378, 7
        %v380 = vsub.s32 3, %v379
        %v381 = vrot.slane %v338, %v380
        %383 = vbcast.lane.b32.xlu0 %v381, 256
        %v384 = vpop.permute.xlu0 %383
        %s386 = sor.u32 256, 8
        %387 = vbcast.lane.b32.xlu0 %v381, %s386
        %v388 = vpop.permute.xlu0 %387
        %v389 = vlaneseq
        %v390 = vshrl.u32 %v389, 7
        %v391 = vsub.s32 4, %v390
        %v392 = vrot.slane %v338, %v391
        %394 = vbcast.lane.b32.xlu0 %v392, 256
        %v395 = vpop.permute.xlu0 %394
        %s397 = sor.u32 256, 8
        %398 = vbcast.lane.b32.xlu0 %v392, %s397
        %v399 = vpop.permute.xlu0 %398
        %v400 = vlaneseq
        %v401 = vshrl.u32 %v400, 7
        %v402 = vsub.s32 5, %v401
        %v403 = vrot.slane %v338, %v402
        %405 = vbcast.lane.b32.xlu0 %v403, 256
        %v406 = vpop.permute.xlu0 %405
        %s408 = sor.u32 256, 8
        %409 = vbcast.lane.b32.xlu0 %v403, %s408
        %v410 = vpop.permute.xlu0 %409
        %v411 = vlaneseq
        %v412 = vshrl.u32 %v411, 7
        %v413 = vsub.s32 6, %v412
        %v414 = vrot.slane %v338, %v413
        %416 = vbcast.lane.b32.xlu0 %v414, 256
        %v417 = vpop.permute.xlu0 %416
        %s419 = sor.u32 256, 8
        %420 = vbcast.lane.b32.xlu0 %v414, %s419
        %v421 = vpop.permute.xlu0 %420
        %v422 = vlaneseq
        %v423 = vshrl.u32 %v422, 7
        %v424 = vsub.s32 7, %v423
        %v425 = vrot.slane %v338, %v424
        %427 = vbcast.lane.b32.xlu0 %v425, 256
        %v428 = vpop.permute.xlu0 %427
        %s430 = sor.u32 256, 8
        %431 = vbcast.lane.b32.xlu0 %v425, %s430
        %v432 = vpop.permute.xlu0 %431
        %v433 = vlaneseq
        %v434 = vshrl.u32 %v433, 7
        %v435 = vsub.s32 0, %v434
        %v436 = vrot.slane %v339, %v435
        %438 = vbcast.lane.b32.xlu0 %v436, 256
        %v439 = vpop.permute.xlu0 %438
        %s441 = sor.u32 256, 8
        %442 = vbcast.lane.b32.xlu0 %v436, %s441
        %v443 = vpop.permute.xlu0 %442
        %v444 = vlaneseq
        %v445 = vshrl.u32 %v444, 7
        %v446 = vsub.s32 1, %v445
        %v447 = vrot.slane %v339, %v446
        %449 = vbcast.lane.b32.xlu0 %v447, 256
        %v450 = vpop.permute.xlu0 %449
        %s452 = sor.u32 256, 8
        %453 = vbcast.lane.b32.xlu0 %v447, %s452
        %v454 = vpop.permute.xlu0 %453
        %v455 = vlaneseq
        %v456 = vshrl.u32 %v455, 7
        %v457 = vsub.s32 2, %v456
        %v458 = vrot.slane %v339, %v457
        %460 = vbcast.lane.b32.xlu0 %v458, 256
        %v461 = vpop.permute.xlu0 %460
        %s463 = sor.u32 256, 8
        %464 = vbcast.lane.b32.xlu0 %v458, %s463
        %v465 = vpop.permute.xlu0 %464
        %v466 = vlaneseq
        %v467 = vshrl.u32 %v466, 7
        %v468 = vsub.s32 3, %v467
        %v469 = vrot.slane %v339, %v468
        %471 = vbcast.lane.b32.xlu0 %v469, 256
        %v472 = vpop.permute.xlu0 %471
        %s474 = sor.u32 256, 8
        %475 = vbcast.lane.b32.xlu0 %v469, %s474
        %v476 = vpop.permute.xlu0 %475
        %v477 = vlaneseq
        %v478 = vshrl.u32 %v477, 7
        %v479 = vsub.s32 4, %v478
        %v480 = vrot.slane %v339, %v479
        %482 = vbcast.lane.b32.xlu0 %v480, 256
        %v483 = vpop.permute.xlu0 %482
        %s485 = sor.u32 256, 8
        %486 = vbcast.lane.b32.xlu0 %v480, %s485
        %v487 = vpop.permute.xlu0 %486
        %v488 = vlaneseq
        %v489 = vshrl.u32 %v488, 7
        %v490 = vsub.s32 5, %v489
        %v491 = vrot.slane %v339, %v490
        %493 = vbcast.lane.b32.xlu0 %v491, 256
        %v494 = vpop.permute.xlu0 %493
        %s496 = sor.u32 256, 8
        %497 = vbcast.lane.b32.xlu0 %v491, %s496
        %v498 = vpop.permute.xlu0 %497
        %v499 = vlaneseq
        %v500 = vshrl.u32 %v499, 7
        %v501 = vsub.s32 6, %v500
        %v502 = vrot.slane %v339, %v501
        %504 = vbcast.lane.b32.xlu0 %v502, 256
        %v505 = vpop.permute.xlu0 %504
        %s507 = sor.u32 256, 8
        %508 = vbcast.lane.b32.xlu0 %v502, %s507
        %v509 = vpop.permute.xlu0 %508
        %v510 = vlaneseq
        %v511 = vshrl.u32 %v510, 7
        %v512 = vsub.s32 7, %v511
        %v513 = vrot.slane %v339, %v512
        %515 = vbcast.lane.b32.xlu0 %v513, 256
        %v516 = vpop.permute.xlu0 %515
        %s518 = sor.u32 256, 8
        %519 = vbcast.lane.b32.xlu0 %v513, %s518
        %v520 = vpop.permute.xlu0 %519
        %vm521 = vcmp.eq.s32.totalorder %v351, %v344
        %vm522 = vcmp.eq.s32.totalorder %v355, %v344
        %vm523 = vcmp.eq.s32.totalorder %v362, %v344
        %vm524 = vcmp.eq.s32.totalorder %v366, %v344
        %vm525 = vcmp.eq.s32.totalorder %v373, %v344
        %vm526 = vcmp.eq.s32.totalorder %v377, %v344
        %vm527 = vcmp.eq.s32.totalorder %v384, %v344
        %vm528 = vcmp.eq.s32.totalorder %v388, %v344
        %vm529 = vcmp.eq.s32.totalorder %v395, %v344
        %vm530 = vcmp.eq.s32.totalorder %v399, %v344
        %vm531 = vcmp.eq.s32.totalorder %v406, %v344
        %vm532 = vcmp.eq.s32.totalorder %v410, %v344
        %vm533 = vcmp.eq.s32.totalorder %v417, %v344
        %vm534 = vcmp.eq.s32.totalorder %v421, %v344
        %vm535 = vcmp.eq.s32.totalorder %v428, %v344
        %vm536 = vcmp.eq.s32.totalorder %v432, %v344
        %vm537 = vcmp.eq.s32.totalorder %v439, %v344
        %vm538 = vcmp.eq.s32.totalorder %v443, %v344
        %vm539 = vcmp.eq.s32.totalorder %v450, %v344
        %vm540 = vcmp.eq.s32.totalorder %v454, %v344
        %vm541 = vcmp.eq.s32.totalorder %v461, %v344
        %vm542 = vcmp.eq.s32.totalorder %v465, %v344
        %vm543 = vcmp.eq.s32.totalorder %v472, %v344
        %vm544 = vcmp.eq.s32.totalorder %v476, %v344
        %vm545 = vcmp.eq.s32.totalorder %v483, %v344
        %vm546 = vcmp.eq.s32.totalorder %v487, %v344
        %vm547 = vcmp.eq.s32.totalorder %v494, %v344
        %vm548 = vcmp.eq.s32.totalorder %v498, %v344
        %vm549 = vcmp.eq.s32.totalorder %v505, %v344
        %vm550 = vcmp.eq.s32.totalorder %v509, %v344
        %vm551 = vcmp.eq.s32.totalorder %v516, %v344
        %vm552 = vcmp.eq.s32.totalorder %v520, %v344
        %v553 = vsel %vm521, 1, 0
        %v554 = vsel %vm522, 1, 0
        %v555 = vsel %vm523, 1, 0
        %v556 = vsel %vm524, 1, 0
        %v557 = vsel %vm525, 1, 0
        %v558 = vsel %vm526, 1, 0
        %v559 = vsel %vm527, 1, 0
        %v560 = vsel %vm528, 1, 0
        %v561 = vsel %vm529, 1, 0
        %v562 = vsel %vm530, 1, 0
        %v563 = vsel %vm531, 1, 0
        %v564 = vsel %vm532, 1, 0
        %v565 = vsel %vm533, 1, 0
        %v566 = vsel %vm534, 1, 0
        %v567 = vsel %vm535, 1, 0
        %v568 = vsel %vm536, 1, 0
        %v569 = vsel %vm537, 1, 0
        %v570 = vsel %vm538, 1, 0
        %v571 = vsel %vm539, 1, 0
        %v572 = vsel %vm540, 1, 0
        %v573 = vsel %vm541, 1, 0
        %v574 = vsel %vm542, 1, 0
        %v575 = vsel %vm543, 1, 0
        %v576 = vsel %vm544, 1, 0
        %v577 = vsel %vm545, 1, 0
        %v578 = vsel %vm546, 1, 0
        %v579 = vsel %vm547, 1, 0
        %v580 = vsel %vm548, 1, 0
        %v581 = vsel %vm549, 1, 0
        %v582 = vsel %vm550, 1, 0
        %v583 = vsel %vm551, 1, 0
        %v584 = vsel %vm552, 1, 0
        %v585 = vcvt.s32.f32 %v553
        %v586 = vcvt.s32.f32 %v554
        %v587 = vcvt.s32.f32 %v555
        %v588 = vcvt.s32.f32 %v556
        %v589 = vcvt.s32.f32 %v557
        %v590 = vcvt.s32.f32 %v558
        %v591 = vcvt.s32.f32 %v559
        %v592 = vcvt.s32.f32 %v560
        %v593 = vcvt.s32.f32 %v561
        %v594 = vcvt.s32.f32 %v562
        %v595 = vcvt.s32.f32 %v563
        %v596 = vcvt.s32.f32 %v564
        %v597 = vcvt.s32.f32 %v565
        %v598 = vcvt.s32.f32 %v566
        %v599 = vcvt.s32.f32 %v567
        %v600 = vcvt.s32.f32 %v568
        %v601 = vcvt.s32.f32 %v569
        %v602 = vcvt.s32.f32 %v570
        %v603 = vcvt.s32.f32 %v571
        %v604 = vcvt.s32.f32 %v572
        %v605 = vcvt.s32.f32 %v573
        %v606 = vcvt.s32.f32 %v574
        %v607 = vcvt.s32.f32 %v575
        %v608 = vcvt.s32.f32 %v576
        %v609 = vcvt.s32.f32 %v577
        %v610 = vcvt.s32.f32 %v578
        %v611 = vcvt.s32.f32 %v579
        %v612 = vcvt.s32.f32 %v580
        %v613 = vcvt.s32.f32 %v581
        %v614 = vcvt.s32.f32 %v582
        %v615 = vcvt.s32.f32 %v583
        %v616 = vcvt.s32.f32 %v584
        %v617 = vpack.c.bf16 %v586, %v585
        %v618 = vpack.c.bf16 %v588, %v587
        %v619 = vpack.c.bf16 %v590, %v589
        %v620 = vpack.c.bf16 %v592, %v591
        %v621 = vpack.c.bf16 %v594, %v593
        %v622 = vpack.c.bf16 %v596, %v595
        %v623 = vpack.c.bf16 %v598, %v597
        %v624 = vpack.c.bf16 %v600, %v599
        %v625 = vpack.c.bf16 %v602, %v601
        %v626 = vpack.c.bf16 %v604, %v603
        %v627 = vpack.c.bf16 %v606, %v605
        %v628 = vpack.c.bf16 %v608, %v607
        %v629 = vpack.c.bf16 %v610, %v609
        %v630 = vpack.c.bf16 %v612, %v611
        %v631 = vpack.c.bf16 %v614, %v613
        %v632 = vpack.c.bf16 %v616, %v615
        %v633 = vld [vmem:[%s3] sm:$0xf]
        %v634 = vld [vmem:[%s3 + $0x4] sm:$0xf]
        %v635 = vld [vmem:[%s3 + $0x8] sm:$0xf]
        %v636 = vld [vmem:[%s3 + $0xc] sm:$0xf]
        %v637 = vld [vmem:[%s3 + $0x10] sm:$0x3]
        %v643 = vunpack.c.l.b16 %v633
        %v644 = vunpack.c.l.b16 %v634
        %v645 = vunpack.c.l.b16 %v635
        %v646 = vunpack.c.l.b16 %v636
        %v647 = vunpack.c.l.b16 %v637
        %v648 = vpack.c.b16 %v644, %v643
        %v649 = vpack.c.b16 %v646, %v645
        %v650 = vpack.c.b16 %v647, %v647
        %vm653 = vcmask 293888
        %v655 = vsel %vm653, %v617, 0
        %v658 = vsel %vm653, %v618, 0
        %v661 = vsel %vm653, %v619, 0
        %v664 = vsel %vm653, %v620, 0
        %v667 = vsel %vm653, %v621, 0
        %v670 = vsel %vm653, %v622, 0
        %v673 = vsel %vm653, %v623, 0
        %v676 = vsel %vm653, %v624, 0
        %v679 = vsel %vm653, %v625, 0
        %v682 = vsel %vm653, %v626, 0
        %v685 = vsel %vm653, %v627, 0
        %v688 = vsel %vm653, %v628, 0
        %v691 = vsel %vm653, %v629, 0
        %v694 = vsel %vm653, %v630, 0
        %v697 = vsel %vm653, %v631, 0
        %v700 = vsel %vm653, %v632, 0
        %vm702 = vcmask 1041408
        %v704 = vsel %vm702, %v650, 0
        %706 = vmatprep.subr.bf16.mxu0 0
        %707 = vmatpush1.bf16.msra.mxu0 %v648
        %708 = vmatprep.subr.bf16.mxu0 0
        %709 = vmatpush1.bf16.msra.mxu0 %v649
        %710 = vmatprep.subr.bf16.mxu0 0
        %711 = vmatpush1.bf16.msra.mxu0 %v704
        %712 = vmatprep.subr.bf16.mxu0 0
        %713 = vmatpush1.bf16.msra.mxu0 0
        %714 = vmatprep.subr.bf16.mxu0 0
        %715 = vmatpush1.bf16.msra.mxu0 0
        %716 = vmatprep.subr.bf16.mxu0 0
        %717 = vmatpush1.bf16.msra.mxu0 0
        %718 = vmatprep.subr.bf16.mxu0 0
        %719 = vmatpush1.bf16.msra.mxu0 0
        %720 = vmatprep.subr.bf16.mxu0 0
        %721 = vmatpush1.bf16.msra.mxu0 0
        %722 = vmatprep.subr.bf16.mxu0 0
        %723 = vmatpush1.bf16.msra.mxu0 0
        %724 = vmatprep.subr.bf16.mxu0 0
        %725 = vmatpush1.bf16.msra.mxu0 0
        %726 = vmatprep.subr.bf16.mxu0 0
        %727 = vmatpush1.bf16.msra.mxu0 0
        %728 = vmatprep.subr.bf16.mxu0 0
        %729 = vmatpush1.bf16.msra.mxu0 0
        %730 = vmatprep.subr.bf16.mxu0 0
        %731 = vmatpush1.bf16.msra.mxu0 0
        %732 = vmatprep.subr.bf16.mxu0 0
        %733 = vmatpush1.bf16.msra.mxu0 0
        %734 = vmatprep.subr.bf16.mxu0 0
        %735 = vmatpush1.bf16.msra.mxu0 0
        %736 = vmatprep.subr.bf16.mxu0 0
        %737 = vmatpush1.bf16.msra.mxu0 0
        %738 = vmatprep.mubr.bf16.mxu0 0
        %739 = vmatmul.mubr.bf16.gmra.mrb[0].mxu0 %v655
        %v740 = vpop.f32.mrb[0].mxu0
        %v741 = vadd.f32 0.0, %v740
        %v742 = vpop.f32.mrb[0].mxu0
        %v743 = vpop.f32.mrb[0].mxu0
        %v744 = vadd.f32 0.0, %v743
        %v745 = vpop.f32.mrb[0].mxu0
        %746 = vmatprep.mubr.bf16.mxu0 0
        %747 = vmatmul.mubr.bf16.gmra.mrb[0].mxu0 %v658
        %v748 = vpop.f32.mrb[0].mxu0
        %v749 = vadd.f32 0.0, %v748
        %v750 = vpop.f32.mrb[0].mxu0
        %v751 = vpop.f32.mrb[0].mxu0
        %v752 = vadd.f32 0.0, %v751
        %v753 = vpop.f32.mrb[0].mxu0
        %754 = vmatprep.mubr.bf16.mxu0 0
        %755 = vmatmul.mubr.bf16.gmra.mrb[0].mxu0 %v661
        %v756 = vpop.f32.mrb[0].mxu0
        %v757 = vadd.f32 0.0, %v756
        %v758 = vpop.f32.mrb[0].mxu0
        %v759 = vpop.f32.mrb[0].mxu0
        %v760 = vadd.f32 0.0, %v759
        %v761 = vpop.f32.mrb[0].mxu0
        %762 = vmatprep.mubr.bf16.mxu0 0
        %763 = vmatmul.mubr.bf16.gmra.mrb[0].mxu0 %v664
        %v764 = vpop.f32.mrb[0].mxu0
        %v765 = vadd.f32 0.0, %v764
        %v766 = vpop.f32.mrb[0].mxu0
        %v767 = vpop.f32.mrb[0].mxu0
        %v768 = vadd.f32 0.0, %v767
        %v769 = vpop.f32.mrb[0].mxu0
        %770 = vmatprep.mubr.bf16.mxu0 0
        %771 = vmatmul.mubr.bf16.gmra.mrb[0].mxu0 %v667
        %v772 = vpop.f32.mrb[0].mxu0
        %v773 = vadd.f32 0.0, %v772
        %v774 = vpop.f32.mrb[0].mxu0
        %v775 = vpop.f32.mrb[0].mxu0
        %v776 = vadd.f32 0.0, %v775
        %v777 = vpop.f32.mrb[0].mxu0
        %778 = vmatprep.mubr.bf16.mxu0 0
        %779 = vmatmul.mubr.bf16.gmra.mrb[0].mxu0 %v670
        %v780 = vpop.f32.mrb[0].mxu0
        %v781 = vadd.f32 0.0, %v780
        %v782 = vpop.f32.mrb[0].mxu0
        %v783 = vpop.f32.mrb[0].mxu0
        %v784 = vadd.f32 0.0, %v783
        %v785 = vpop.f32.mrb[0].mxu0
        %786 = vmatprep.mubr.bf16.mxu0 0
        %787 = vmatmul.mubr.bf16.gmra.mrb[0].mxu0 %v673
        %v788 = vpop.f32.mrb[0].mxu0
        %v789 = vadd.f32 0.0, %v788
        %v790 = vpop.f32.mrb[0].mxu0
        %v791 = vpop.f32.mrb[0].mxu0
        %v792 = vadd.f32 0.0, %v791
        %v793 = vpop.f32.mrb[0].mxu0
        %794 = vmatprep.mubr.bf16.mxu0 0
        %795 = vmatmul.mubr.bf16.gmra.mrb[0].mxu0 %v676
        %v796 = vpop.f32.mrb[0].mxu0
        %v797 = vadd.f32 0.0, %v796
        %v798 = vpop.f32.mrb[0].mxu0
        %v799 = vpop.f32.mrb[0].mxu0
        %v800 = vadd.f32 0.0, %v799
        %v801 = vpop.f32.mrb[0].mxu0
        %802 = vmatprep.mubr.bf16.mxu0 0
        %803 = vmatmul.mubr.bf16.gmra.mrb[0].mxu0 %v679
        %v804 = vpop.f32.mrb[0].mxu0
        %v805 = vadd.f32 0.0, %v804
        %v806 = vpop.f32.mrb[0].mxu0
        %v807 = vpop.f32.mrb[0].mxu0
        %v808 = vadd.f32 0.0, %v807
        %v809 = vpop.f32.mrb[0].mxu0
        %810 = vmatprep.mubr.bf16.mxu0 0
        %811 = vmatmul.mubr.bf16.gmra.mrb[0].mxu0 %v682
        %v812 = vpop.f32.mrb[0].mxu0
        %v813 = vadd.f32 0.0, %v812
        %v814 = vpop.f32.mrb[0].mxu0
        %v815 = vpop.f32.mrb[0].mxu0
        %v816 = vadd.f32 0.0, %v815
        %v817 = vpop.f32.mrb[0].mxu0
        %818 = vmatprep.mubr.bf16.mxu0 0
        %819 = vmatmul.mubr.bf16.gmra.mrb[0].mxu0 %v685
        %v820 = vpop.f32.mrb[0].mxu0
        %v821 = vadd.f32 0.0, %v820
        %v822 = vpop.f32.mrb[0].mxu0
        %v823 = vpop.f32.mrb[0].mxu0
        %v824 = vadd.f32 0.0, %v823
        %v825 = vpop.f32.mrb[0].mxu0
        %826 = vmatprep.mubr.bf16.mxu0 0
        %827 = vmatmul.mubr.bf16.gmra.mrb[0].mxu0 %v688
        %v828 = vpop.f32.mrb[0].mxu0
        %v829 = vadd.f32 0.0, %v828
        %v830 = vpop.f32.mrb[0].mxu0
        %v831 = vpop.f32.mrb[0].mxu0
        %v832 = vadd.f32 0.0, %v831
        %v833 = vpop.f32.mrb[0].mxu0
        %834 = vmatprep.mubr.bf16.mxu0 0
        %835 = vmatmul.mubr.bf16.gmra.mrb[0].mxu0 %v691
        %v836 = vpop.f32.mrb[0].mxu0
        %v837 = vadd.f32 0.0, %v836
        %v838 = vpop.f32.mrb[0].mxu0
        %v839 = vpop.f32.mrb[0].mxu0
        %v840 = vadd.f32 0.0, %v839
        %v841 = vpop.f32.mrb[0].mxu0
        %842 = vmatprep.mubr.bf16.mxu0 0
        %843 = vmatmul.mubr.bf16.gmra.mrb[0].mxu0 %v694
        %v844 = vpop.f32.mrb[0].mxu0
        %v845 = vadd.f32 0.0, %v844
        %v846 = vpop.f32.mrb[0].mxu0
        %v847 = vpop.f32.mrb[0].mxu0
        %v848 = vadd.f32 0.0, %v847
        %v849 = vpop.f32.mrb[0].mxu0
        %850 = vmatprep.mubr.bf16.mxu0 0
        %851 = vmatmul.mubr.bf16.gmra.mrb[0].mxu0 %v697
        %v852 = vpop.f32.mrb[0].mxu0
        %v853 = vadd.f32 0.0, %v852
        %v854 = vpop.f32.mrb[0].mxu0
        %v855 = vpop.f32.mrb[0].mxu0
        %v856 = vadd.f32 0.0, %v855
        %v857 = vpop.f32.mrb[0].mxu0
        %858 = vmatprep.mubr.bf16.mxu0 0
        %859 = vmatmul.mubr.bf16.gmra.mrb[0].mxu0 %v700
        %v860 = vpop.f32.mrb[0].mxu0
        %v861 = vadd.f32 0.0, %v860
        %v862 = vpop.f32.mrb[0].mxu0
        %v863 = vpop.f32.mrb[0].mxu0
        %v864 = vadd.f32 0.0, %v863
        %v865 = vpop.f32.mrb[0].mxu0
        %866 = vdwg.mxu0
        %867 = vst [vmem:[%s269] sm:$0xff] %v741
        %868 = vst [vmem:[%s269 + $0x8] sm:$0xff] %v744
        %869 = vst [vmem:[%s269 + $0x10] sm:$0xff] %v749
        %870 = vst [vmem:[%s269 + $0x18] sm:$0xff] %v752
        %871 = vst [vmem:[%s269 + $0x20] sm:$0xff] %v757
        %872 = vst [vmem:[%s269 + $0x28] sm:$0xff] %v760
        %873 = vst [vmem:[%s269 + $0x30] sm:$0xff] %v765
        %874 = vst [vmem:[%s269 + $0x38] sm:$0xff] %v768
        %875 = vst [vmem:[%s269 + $0x40] sm:$0xff] %v773
        %876 = vst [vmem:[%s269 + $0x48] sm:$0xff] %v776
        %877 = vst [vmem:[%s269 + $0x50] sm:$0xff] %v781
        %878 = vst [vmem:[%s269 + $0x58] sm:$0xff] %v784
        %879 = vst [vmem:[%s269 + $0x60] sm:$0xff] %v789
        %880 = vst [vmem:[%s269 + $0x68] sm:$0xff] %v792
        %881 = vst [vmem:[%s269 + $0x70] sm:$0xff] %v797
        %882 = vst [vmem:[%s269 + $0x78] sm:$0xff] %v800
        %883 = vst [vmem:[%s269 + $0x80] sm:$0xff] %v805
        %884 = vst [vmem:[%s269 + $0x88] sm:$0xff] %v808
        %885 = vst [vmem:[%s269 + $0x90] sm:$0xff] %v813
        %886 = vst [vmem:[%s269 + $0x98] sm:$0xff] %v816
        %887 = vst [vmem:[%s269 + $0xa0] sm:$0xff] %v821
        %888 = vst [vmem:[%s269 + $0xa8] sm:$0xff] %v824
        %889 = vst [vmem:[%s269 + $0xb0] sm:$0xff] %v829
        %890 = vst [vmem:[%s269 + $0xb8] sm:$0xff] %v832
        %891 = vst [vmem:[%s269 + $0xc0] sm:$0xff] %v837
        %892 = vst [vmem:[%s269 + $0xc8] sm:$0xff] %v840
        %893 = vst [vmem:[%s269 + $0xd0] sm:$0xff] %v845
        %894 = vst [vmem:[%s269 + $0xd8] sm:$0xff] %v848
        %895 = vst [vmem:[%s269 + $0xe0] sm:$0xff] %v853
        %896 = vst [vmem:[%s269 + $0xe8] sm:$0xff] %v856
        %897 = vst [vmem:[%s269 + $0xf0] sm:$0xff] %v861
        %898 = vst [vmem:[%s269 + $0xf8] sm:$0xff] %v864
        %s899 = sand.u32 %s154, 1
        %s900 = scalar_lea.sflag [#allocation3], %s899
        %s901 = sand.u32 %s154, 1
        %s902 = smul.addr %s901, 256
        %s903 = scalar_lea.vmem [#allocation2], %s902
        // Predicated region
        $region37: #{tpu_custom_call.1} parent=35 // pred_check
          %p904 = pneg %p164
        $region38: #{tpu_custom_call.1} parent=35 // pred_check_branch
          %906 = sbr.rel (%p904) target = $region40
        $region39: #{tpu_custom_call.1} parent=35 // pred_region
          %s907 = smul.u32 16, %s24
          %s908 = smul.u32 2, %s25
          %s910 = ssub.s32 4096, 4096
          %911 = vsyncadd %s900, %s910
          %s912 = smul.addr %s907, 2
          %s913 = sadd.s32 %s908, %s912
          %s914 = smul.addr %s23, 32
          %s915 = sadd.s32 %s913, %s914
          %s916 = smul.addr %s915, 128
          %s917 = scalar_lea.hbm %s4, %s916
          %s918 = sshll.u32 %s903, 4
          %s919 = int_to_ptr.vmem [resolvable:$true] %s918
          %924 = dma.vmem_to_hbm [thread:$0]  %s919, 4096, %s917, %s900, 128, 128, 8
        $region40: #{tpu_custom_call.1} parent=35 // pred_fallthru
          _
      $region36: #{tpu_custom_call.1} parent=5 // pred_fallthru
        _
      %p925 = scmp.le.s32.totalorder 2, %s13
      // Predicated region
      $region41: #{tpu_custom_call.1} parent=5 // pred_check
        %p926 = pneg %p925
      $region42: #{tpu_custom_call.1} parent=5 // pred_check_branch
        %928 = sbr.rel (%p926) target = $region44
      $region43: #{tpu_custom_call.1} parent=5 // pred_region
        %s929 = ssub.s32 %s13, 2
        // Predicated region
        $region45: #{tpu_custom_call.1} parent=43 // pred_check
          %p930 = pneg %p170
        $region46: #{tpu_custom_call.1} parent=43 // pred_check_branch
          %932 = sbr.rel (%p930) target = $region48
        $region47: #{tpu_custom_call.1} parent=43 // pred_region
          %s933 = sand.u32 %s155, 1
          %s934 = scalar_lea.sflag [#allocation3], %s933
          %s935 = sand.u32 %s155, 1
          %s936 = smul.addr %s935, 256
          %s937 = scalar_lea.vmem [#allocation2], %s936
          %938 = dma.done %s934, 4096
        $region48: #{tpu_custom_call.1} parent=43 // pred_fallthru
          _
      $region44: #{tpu_custom_call.1} parent=5 // pred_fallthru
        _
    $region6: #{tpu_custom_call.1} parent=1 // loop_footer
      %s17 = sadd.s32 1, %s13
    $region7: #{tpu_custom_call.1} parent=1 // loop_footer_branch
      %12 = sbr.rel target = $region3
    $region8: #{tpu_custom_call.1} parent=1 // loop_exit
      _
    %939 = vsyncpa [#allocation3], 1
    %s940 = scalar_lea.sflag [#allocation3], 1
    %941 = vsyncpa %s940, 1

</llo_original>
